<compile_context>
chip_gen: v7x
topology: tpu7x:2x2x1
jax: 0.10.0
libtpu: 0.0.40
codegen_flags: <defaults>
</compile_context>

<pallas_src>
import functools

import jax
import jax.numpy as jnp
from jax.experimental import pallas as pl
from jax.experimental.pallas import tpu as pltpu


def _round_up(x, m):
    return ((x + m - 1) // m) * m


def _default_activation_dtype():
    """bf16 tanh only where the EUP/VPU are bf16-native (v6e / v7x)."""
    try:
        kind = jax.devices()[0].device_kind.lower()
    except Exception:
        return jnp.float32
    return jnp.bfloat16 if ("v6" in kind or "v7" in kind) else jnp.float32


def actor_kernel(x_ref, w1_ref, b1_ref, w2_ref, b2_ref, w3_ref, b3_ref,
                 wh_ref, bh_ref, out_ref, *, act_dtype):
    cd = w1_ref.dtype  # MXU operand dtype (bf16); accumulation stays f32.

    def layer(a, w_ref, b_ref):
        z = jnp.dot(a, w_ref[...], preferred_element_type=jnp.float32) + b_ref[...]
        # tanh in act_dtype (bf16 on v6e/v7x, f32 on v5e); activation is then
        # carried in bf16 so inter-layer staging is half-width on every chip.
        return jnp.tanh(z.astype(act_dtype)).astype(cd)

    h = layer(x_ref[...].astype(cd), w1_ref, b1_ref)
    h = layer(h, w2_ref, b2_ref)
    h = layer(h, w3_ref, b3_ref)

    # Fused alpha|beta head; bh already holds (bias + 1.0), so
    #   relu(h@W + b) + 1 == max(h@W + (b + 1), 1).
    z = jnp.dot(h, wh_ref[...], preferred_element_type=jnp.float32) + bh_ref[...]
    out_ref[...] = jnp.maximum(z, 1.0).astype(out_ref.dtype)


@functools.partial(
    jax.jit,
    static_argnames=("n_actions", "block_b", "compute_dtype",
                     "activation_dtype", "out_dtype"))
def continuous_actor_forward(state, params, *, n_actions, block_b=2048,
                             compute_dtype=jnp.bfloat16,
                             activation_dtype=None,
                             out_dtype=jnp.float32):
    """state: [B, input_dims] f32. params: dict of transposed weights/biases."""
    B, in_dims = state.shape
    H = params["w1"].shape[1]
    act_dtype = (activation_dtype if activation_dtype is not None
                 else _default_activation_dtype())

    # --- Fuse heads, fold +1.0 into bias, pad to a lane-dense 128 multiple ---
    two_a = 2 * n_actions
    n_pad = _round_up(max(two_a, 128), 128)
    wh = jnp.concatenate([params["wa"], params["wb"]], axis=1)
    bh = jnp.concatenate([params["ba"], params["bb"]], axis=1) + 1.0
    wh = jnp.pad(wh, ((0, 0), (0, n_pad - two_a)))
    bh = jnp.pad(bh, ((0, 0), (0, n_pad - two_a)))

    cd = compute_dtype
    w1 = params["w1"].astype(cd)
    w2 = params["w2"].astype(cd)
    w3 = params["w3"].astype(cd)
    wh = wh.astype(cd)
    b1, b2, b3 = params["b1"], params["b2"], params["b3"]  # biases stay f32.

    # --- Batch tiling: TB rows per grid step, weights resident across steps ---
    tb = min(block_b, _round_up(B, 8))
    if B >= 1024:
        # Guarantee >= 2 grid steps so dimension_semantics=("parallel",) can
        # shard the batch across both v7x TensorCores; keep each step >= 512
        # rows so the ~0.35 us per-grid-step overhead stays amortized.
        tb = min(tb, max(512, _round_up(pl.cdiv(B, 2), 256)))
    bp = _round_up(B, tb)
    x = state if bp == B else jnp.pad(state, ((0, bp - B), (0, 0)))

    const = lambda i: (0, 0)
    out = pl.pallas_call(
        functools.partial(actor_kernel, act_dtype=act_dtype),
        out_shape=jax.ShapeDtypeStruct((bp, n_pad), out_dtype),
        grid=(bp // tb,),
        in_specs=[
            pl.BlockSpec((tb, in_dims), lambda i: (i, 0)),  # state tile
            pl.BlockSpec((in_dims, H), const),              # w1
            pl.BlockSpec((1, H), const),                    # b1
            pl.BlockSpec((H, H), const),                    # w2
            pl.BlockSpec((1, H), const),                    # b2
            pl.BlockSpec((H, H), const),                    # w3
            pl.BlockSpec((1, H), const),                    # b3
            pl.BlockSpec((H, n_pad), const),                # fused head weight
            pl.BlockSpec((1, n_pad), const),                # fused head bias+1
        ],
        out_specs=pl.BlockSpec((tb, n_pad), lambda i: (i, 0)),
        compiler_params=pltpu.CompilerParams(
            dimension_semantics=("parallel",)),
    )(x, w1, b1, w2, b2, w3, b3, wh, bh)

    # Single slice of the padded slab, then split alpha/beta on the small view.
    ab = out[:B, :two_a]
    alpha = ab[:, :n_actions]
    beta = ab[:, n_actions:]
    return alpha, beta


def init_params(key, input_dims, hidden_dims, n_actions):
    """Deterministic synthetic init (uniform, roughly torch-Linear-like scale)."""
    def linear(k, fan_in, fan_out):
        kw, kb = jax.random.split(k)
        bound = 1.0 / jnp.sqrt(fan_in)
        w = jax.random.uniform(kw, (fan_in, fan_out), jnp.float32, -bound, bound)
        b = jax.random.uniform(kb, (1, fan_out), jnp.float32, -bound, bound)
        return w, b

    k1, k2, k3, ka, kb = jax.random.split(key, 5)
    w1, b1 = linear(k1, input_dims, hidden_dims)
    w2, b2 = linear(k2, hidden_dims, hidden_dims)
    w3, b3 = linear(k3, hidden_dims, hidden_dims)
    wa, ba = linear(ka, hidden_dims, n_actions)
    wb, bb = linear(kb, hidden_dims, n_actions)
    return {"w1": w1, "b1": b1, "w2": w2, "b2": b2, "w3": w3, "b3": b3,
            "wa": wa, "ba": ba, "wb": wb, "bb": bb}


def reference_forward(state, p, compute_dtype=jnp.bfloat16, activation_dtype=None):
    """Plain-JAX reference mirroring the kernel's dtype choices."""
    cd = compute_dtype
    ad = (activation_dtype if activation_dtype is not None
          else _default_activation_dtype())

    def dot(a, w):
        return jnp.dot(a.astype(cd), w.astype(cd),
                       preferred_element_type=jnp.float32)

    h = state
    for wk, bk in (("w1", "b1"), ("w2", "b2"), ("w3", "b3")):
        h = jnp.tanh((dot(h, p[wk]) + p[bk]).astype(ad)).astype(cd)
    alpha = jax.nn.relu(dot(h, p["wa"]) + p["ba"]) + 1.0
    beta = jax.nn.relu(dot(h, p["wb"]) + p["bb"]) + 1.0
    return alpha, beta


if __name__ == "__main__":
    B, INPUT_DIMS, HIDDEN, N_ACTIONS = 8, 16, 256, 4

    key = jax.random.PRNGKey(0)
    k_state, k_params = jax.random.split(key)
    state = jax.random.normal(k_state, (B, INPUT_DIMS), jnp.float32)
    params = init_params(k_params, INPUT_DIMS, HIDDEN, N_ACTIONS)

    alpha, beta = continuous_actor_forward(state, params, n_actions=N_ACTIONS)
    jax.block_until_ready((alpha, beta))

    # Cross-check against a plain-JAX reference with matching compute dtypes.
    ref_alpha, ref_beta = reference_forward(state, params)
    assert alpha.shape == (B, N_ACTIONS) and beta.shape == (B, N_ACTIONS)
    assert jnp.allclose(alpha, ref_alpha, atol=5e-3, rtol=5e-3)
    assert jnp.allclose(beta, ref_beta, atol=5e-3, rtol=5e-3)
    assert bool(jnp.all(alpha >= 1.0)) and bool(jnp.all(beta >= 1.0))

    print("KERNEL_OK")
</pallas_src>

<mosaic_0001>
module attributes {stable_mosaic.version = 11 : i64} {
  func.func @actor_kernel(%arg0: i32, %arg1: memref<8x16xf32, #tpu.memory_space<vmem>>, %arg2: memref<16x256xbf16, #tpu.memory_space<vmem>>, %arg3: memref<1x256xf32, #tpu.memory_space<vmem>>, %arg4: memref<256x256xbf16, #tpu.memory_space<vmem>>, %arg5: memref<1x256xf32, #tpu.memory_space<vmem>>, %arg6: memref<256x256xbf16, #tpu.memory_space<vmem>>, %arg7: memref<1x256xf32, #tpu.memory_space<vmem>>, %arg8: memref<256x128xbf16, #tpu.memory_space<vmem>>, %arg9: memref<1x128xf32, #tpu.memory_space<vmem>>, %arg10: memref<8x128xf32, #tpu.memory_space<vmem>>) attributes {dimension_semantics = [#tpu.dimension_semantics<parallel>], iteration_bounds = array<i64: 1>, scalar_prefetch = 0 : i64, scratch_operands = 0 : i64, tpu.core_type = #tpu.core_type<tc>, window_params = [{transform_indices = @transform_0, window_bounds = array<i64: 8, 16>}, {pipeline_mode = #tpu.pipeline_mode<synchronous>, transform_indices = @transform_1, window_bounds = array<i64: 16, 256>}, {pipeline_mode = #tpu.pipeline_mode<synchronous>, transform_indices = @transform_2, window_bounds = array<i64: 1, 256>}, {pipeline_mode = #tpu.pipeline_mode<synchronous>, transform_indices = @transform_3, window_bounds = array<i64: 256, 256>}, {pipeline_mode = #tpu.pipeline_mode<synchronous>, transform_indices = @transform_4, window_bounds = array<i64: 1, 256>}, {pipeline_mode = #tpu.pipeline_mode<synchronous>, transform_indices = @transform_5, window_bounds = array<i64: 256, 256>}, {pipeline_mode = #tpu.pipeline_mode<synchronous>, transform_indices = @transform_6, window_bounds = array<i64: 1, 256>}, {pipeline_mode = #tpu.pipeline_mode<synchronous>, transform_indices = @transform_7, window_bounds = array<i64: 256, 128>}, {pipeline_mode = #tpu.pipeline_mode<synchronous>, transform_indices = @transform_8, window_bounds = array<i64: 1, 128>}, {transform_indices = @transform_9, window_bounds = array<i64: 8, 128>}]} {
    %c0 = arith.constant 0 : index
    %c0_0 = arith.constant 0 : index
    %0 = vector.load %arg1[%c0, %c0_0] : memref<8x16xf32, #tpu.memory_space<vmem>>, vector<8x16xf32>
    %1 = arith.truncf %0 : vector<8x16xf32> to vector<8x16xbf16>
    %c0_1 = arith.constant 0 : index
    %c0_2 = arith.constant 0 : index
    %2 = vector.load %arg2[%c0_1, %c0_2] : memref<16x256xbf16, #tpu.memory_space<vmem>>, vector<16x256xbf16>
    %cst = arith.constant dense<0.000000e+00> : vector<8x256xf32>
    %3 = tpu.matmul %1, %2, %cst {dimension_numbers = #tpu.dot_dimension_numbers<[1], [0], [0], [1], [0, 0, 1, 1], [], []>} : vector<8x16xbf16>, vector<16x256xbf16>, vector<8x256xf32> -> vector<8x256xf32>
    %c0_3 = arith.constant 0 : index
    %c0_4 = arith.constant 0 : index
    %4 = vector.load %arg3[%c0_3, %c0_4] : memref<1x256xf32, #tpu.memory_space<vmem>>, vector<1x256xf32>
    %5 = vector.broadcast %4 : vector<1x256xf32> to vector<8x256xf32>
    %6 = arith.addf %3, %5 : vector<8x256xf32>
    %7 = math.tanh %6 : vector<8x256xf32>
    %8 = arith.truncf %7 : vector<8x256xf32> to vector<8x256xbf16>
    %c0_5 = arith.constant 0 : index
    %c0_6 = arith.constant 0 : index
    %9 = vector.load %arg4[%c0_5, %c0_6] : memref<256x256xbf16, #tpu.memory_space<vmem>>, vector<256x256xbf16>
    %cst_7 = arith.constant dense<0.000000e+00> : vector<8x256xf32>
    %10 = tpu.matmul %8, %9, %cst_7 {dimension_numbers = #tpu.dot_dimension_numbers<[1], [0], [0], [1], [0, 0, 1, 1], [], []>} : vector<8x256xbf16>, vector<256x256xbf16>, vector<8x256xf32> -> vector<8x256xf32>
    %c0_8 = arith.constant 0 : index
    %c0_9 = arith.constant 0 : index
    %11 = vector.load %arg5[%c0_8, %c0_9] : memref<1x256xf32, #tpu.memory_space<vmem>>, vector<1x256xf32>
    %12 = vector.broadcast %11 : vector<1x256xf32> to vector<8x256xf32>
    %13 = arith.addf %10, %12 : vector<8x256xf32>
    %14 = math.tanh %13 : vector<8x256xf32>
    %15 = arith.truncf %14 : vector<8x256xf32> to vector<8x256xbf16>
    %c0_10 = arith.constant 0 : index
    %c0_11 = arith.constant 0 : index
    %16 = vector.load %arg6[%c0_10, %c0_11] : memref<256x256xbf16, #tpu.memory_space<vmem>>, vector<256x256xbf16>
    %cst_12 = arith.constant dense<0.000000e+00> : vector<8x256xf32>
    %17 = tpu.matmul %15, %16, %cst_12 {dimension_numbers = #tpu.dot_dimension_numbers<[1], [0], [0], [1], [0, 0, 1, 1], [], []>} : vector<8x256xbf16>, vector<256x256xbf16>, vector<8x256xf32> -> vector<8x256xf32>
    %c0_13 = arith.constant 0 : index
    %c0_14 = arith.constant 0 : index
    %18 = vector.load %arg7[%c0_13, %c0_14] : memref<1x256xf32, #tpu.memory_space<vmem>>, vector<1x256xf32>
    %19 = vector.broadcast %18 : vector<1x256xf32> to vector<8x256xf32>
    %20 = arith.addf %17, %19 : vector<8x256xf32>
    %21 = math.tanh %20 : vector<8x256xf32>
    %22 = arith.truncf %21 : vector<8x256xf32> to vector<8x256xbf16>
    %c0_15 = arith.constant 0 : index
    %c0_16 = arith.constant 0 : index
    %23 = vector.load %arg8[%c0_15, %c0_16] : memref<256x128xbf16, #tpu.memory_space<vmem>>, vector<256x128xbf16>
    %cst_17 = arith.constant dense<0.000000e+00> : vector<8x128xf32>
    %24 = tpu.matmul %22, %23, %cst_17 {dimension_numbers = #tpu.dot_dimension_numbers<[1], [0], [0], [1], [0, 0, 1, 1], [], []>} : vector<8x256xbf16>, vector<256x128xbf16>, vector<8x128xf32> -> vector<8x128xf32>
    %c0_18 = arith.constant 0 : index
    %c0_19 = arith.constant 0 : index
    %25 = vector.load %arg9[%c0_18, %c0_19] : memref<1x128xf32, #tpu.memory_space<vmem>>, vector<1x128xf32>
    %26 = vector.broadcast %25 : vector<1x128xf32> to vector<8x128xf32>
    %27 = arith.addf %24, %26 : vector<8x128xf32>
    %cst_20 = arith.constant 1.000000e+00 : f32
    %28 = vector.broadcast %cst_20 : f32 to vector<8x128xf32>
    %29 = arith.maximumf %27, %28 : vector<8x128xf32>
    %c0_21 = arith.constant 0 : index
    %c0_22 = arith.constant 0 : index
    %30 = vector.load %arg10[%c0_21, %c0_22] : memref<8x128xf32, #tpu.memory_space<vmem>>, vector<8x128xf32>
    tpu.vector_store %arg10[%c0_21, %c0_22], %29 {strides = array<i32>} : memref<8x128xf32, #tpu.memory_space<vmem>>, vector<8x128xf32>,
    return
  }
  func.func @transform_0(%arg0: i32) -> (i32, i32) {
    %c0_i32 = arith.constant 0 : i32
    %c0_i32_0 = arith.constant 0 : i32
    return %arg0, %c0_i32 : i32, i32
  }
  func.func @transform_1(%arg0: i32) -> (i32, i32) {
    %c0_i32 = arith.constant 0 : i32
    %c0_i32_0 = arith.constant 0 : i32
    %c0_i32_1 = arith.constant 0 : i32
    return %c0_i32, %c0_i32_0 : i32, i32
  }
  func.func @transform_2(%arg0: i32) -> (i32, i32) {
    %c0_i32 = arith.constant 0 : i32
    %c0_i32_0 = arith.constant 0 : i32
    %c0_i32_1 = arith.constant 0 : i32
    return %c0_i32, %c0_i32_0 : i32, i32
  }
  func.func @transform_3(%arg0: i32) -> (i32, i32) {
    %c0_i32 = arith.constant 0 : i32
    %c0_i32_0 = arith.constant 0 : i32
    %c0_i32_1 = arith.constant 0 : i32
    return %c0_i32, %c0_i32_0 : i32, i32
  }
  func.func @transform_4(%arg0: i32) -> (i32, i32) {
    %c0_i32 = arith.constant 0 : i32
    %c0_i32_0 = arith.constant 0 : i32
    %c0_i32_1 = arith.constant 0 : i32
    return %c0_i32, %c0_i32_0 : i32, i32
  }
  func.func @transform_5(%arg0: i32) -> (i32, i32) {
    %c0_i32 = arith.constant 0 : i32
    %c0_i32_0 = arith.constant 0 : i32
    %c0_i32_1 = arith.constant 0 : i32
    return %c0_i32, %c0_i32_0 : i32, i32
  }
  func.func @transform_6(%arg0: i32) -> (i32, i32) {
    %c0_i32 = arith.constant 0 : i32
    %c0_i32_0 = arith.constant 0 : i32
    %c0_i32_1 = arith.constant 0 : i32
    return %c0_i32, %c0_i32_0 : i32, i32
  }
  func.func @transform_7(%arg0: i32) -> (i32, i32) {
    %c0_i32 = arith.constant 0 : i32
    %c0_i32_0 = arith.constant 0 : i32
    %c0_i32_1 = arith.constant 0 : i32
    return %c0_i32, %c0_i32_0 : i32, i32
  }
  func.func @transform_8(%arg0: i32) -> (i32, i32) {
    %c0_i32 = arith.constant 0 : i32
    %c0_i32_0 = arith.constant 0 : i32
    %c0_i32_1 = arith.constant 0 : i32
    return %c0_i32, %c0_i32_0 : i32, i32
  }
  func.func @transform_9(%arg0: i32) -> (i32, i32) {
    %c0_i32 = arith.constant 0 : i32
    %c0_i32_0 = arith.constant 0 : i32
    return %arg0, %c0_i32 : i32, i32
  }
}

</mosaic_0001>

<llo_original>
// kernel: continuous_actor_forward.1
$region0: #{continuous_actor_forward.1}
  #allocation0 [shape = 'u32[]', space=smem, size = 0x4, offset = 0x4, fixed_abs, tag = 'smem constant byte address 0x4 - core index']
  #allocation1 [shape = 'u32[144,128]{1,0:T(1,128)}', space=vmem, size = 0x12000, scoped, tag = 'internal scratch']
  %s0 = inlined_call_operand.vmem [shape: f32[8,16], index: 0, kind: input, shape index: {}]
  %s1 = inlined_call_operand.vmem [shape: bf16[16,256], index: 1, kind: input, shape index: {}]
  %s2 = inlined_call_operand.vmem [shape: f32[1,256], index: 2, kind: input, shape index: {}]
  %s3 = inlined_call_operand.vmem [shape: bf16[256,256], index: 3, kind: input, shape index: {}]
  %s4 = inlined_call_operand.vmem [shape: f32[1,256], index: 4, kind: input, shape index: {}]
  %s5 = inlined_call_operand.vmem [shape: bf16[256,256], index: 5, kind: input, shape index: {}]
  %s6 = inlined_call_operand.vmem [shape: f32[1,256], index: 6, kind: input, shape index: {}]
  %s7 = inlined_call_operand.vmem [shape: bf16[256,128], index: 7, kind: input, shape index: {}]
  %s8 = inlined_call_operand.vmem [shape: f32[1,128], index: 8, kind: input, shape index: {}]
  %s9 = inlined_call_operand.vmem [shape: f32[8,128], index: 9, kind: output, shape index: {}]
  %s10 = sld [smem:[#allocation0]]
  $region46: #{continuous_actor_forward.1} parent=0
    _
  %s12 = ssub.s32 1, %s10
  %s13 = scalar_select 0, %s12, %s10
  // Predicated region
  $region2: #{continuous_actor_forward.1} parent=0 // pred_check
    _
  $region3: #{continuous_actor_forward.1} parent=0 // pred_check_branch
    %15 = sbr.rel (0) target = $region5
  $region4: #{continuous_actor_forward.1} parent=0 // pred_region
    _
  $region5: #{continuous_actor_forward.1} parent=0 // pred_fallthru
    _
  // Predicated region
  $region6: #{continuous_actor_forward.1} parent=0 // pred_check
    _
  $region7: #{continuous_actor_forward.1} parent=0 // pred_check_branch
    %17 = sbr.rel (0) target = $region9
  $region8: #{continuous_actor_forward.1} parent=0 // pred_region
    _
  $region9: #{continuous_actor_forward.1} parent=0 // pred_fallthru
    _
  // Predicated region
  $region10: #{continuous_actor_forward.1} parent=0 // pred_check
    _
  $region11: #{continuous_actor_forward.1} parent=0 // pred_check_branch
    %19 = sbr.rel (0) target = $region13
  $region12: #{continuous_actor_forward.1} parent=0 // pred_region
    _
  $region13: #{continuous_actor_forward.1} parent=0 // pred_fallthru
    _
  // Predicated region
  $region14: #{continuous_actor_forward.1} parent=0 // pred_check
    _
  $region15: #{continuous_actor_forward.1} parent=0 // pred_check_branch
    %21 = sbr.rel (0) target = $region17
  $region16: #{continuous_actor_forward.1} parent=0 // pred_region
    _
  $region17: #{continuous_actor_forward.1} parent=0 // pred_fallthru
    _
  // Predicated region
  $region18: #{continuous_actor_forward.1} parent=0 // pred_check
    _
  $region19: #{continuous_actor_forward.1} parent=0 // pred_check_branch
    %23 = sbr.rel (0) target = $region21
  $region20: #{continuous_actor_forward.1} parent=0 // pred_region
    _
  $region21: #{continuous_actor_forward.1} parent=0 // pred_fallthru
    _
  // Predicated region
  $region22: #{continuous_actor_forward.1} parent=0 // pred_check
    _
  $region23: #{continuous_actor_forward.1} parent=0 // pred_check_branch
    %25 = sbr.rel (0) target = $region25
  $region24: #{continuous_actor_forward.1} parent=0 // pred_region
    _
  $region25: #{continuous_actor_forward.1} parent=0 // pred_fallthru
    _
  // Predicated region
  $region26: #{continuous_actor_forward.1} parent=0 // pred_check
    _
  $region27: #{continuous_actor_forward.1} parent=0 // pred_check_branch
    %27 = sbr.rel (0) target = $region29
  $region28: #{continuous_actor_forward.1} parent=0 // pred_region
    _
  $region29: #{continuous_actor_forward.1} parent=0 // pred_fallthru
    _
  // Predicated region
  $region30: #{continuous_actor_forward.1} parent=0 // pred_check
    _
  $region31: #{continuous_actor_forward.1} parent=0 // pred_check_branch
    %29 = sbr.rel (0) target = $region33
  $region32: #{continuous_actor_forward.1} parent=0 // pred_region
    _
  $region33: #{continuous_actor_forward.1} parent=0 // pred_fallthru
    _
  // Predicated region
  $region34: #{continuous_actor_forward.1} parent=0 // pred_check
    _
  $region35: #{continuous_actor_forward.1} parent=0 // pred_check_branch
    %31 = sbr.rel (0) target = $region37
  $region36: #{continuous_actor_forward.1} parent=0 // pred_region
    _
  $region37: #{continuous_actor_forward.1} parent=0 // pred_fallthru
    _
  %v33 = vld [vmem:[%s0] sm:$0xff]
  %v34 = vpack.c.bf16 %v33, %v33
  %v35 = vld [vmem:[%s1] sm:$0xff]
  %v36 = vld [vmem:[%s1 + $0x8] sm:$0xff]
  %v37 = vld [vmem:[%s2] sm:$0x3]
  %v39 = vlaneseq
  %v40 = vshrl.u32 %v39, 7
  %v41 = vsub.s32 0, %v40
  %v42 = vrot.slane %v37, %v41
  %v43 = vlaneseq
  %v44 = vshrl.u32 %v43, 7
  %v45 = vsub.s32 1, %v44
  %v46 = vrot.slane %v37, %v45
  %v51 = vunpack.c.l.b16 %v35
  %v52 = vunpack.c.h.b16 %v35
  %v53 = vunpack.c.l.b16 %v36
  %v54 = vunpack.c.h.b16 %v36
  %v55 = vpack.c.b16 %v53, %v51
  %v56 = vpack.c.b16 %v54, %v52
  %vm59 = vcmask 130048
  %v61 = vsel %vm59, %v34, 0
  %63 = vmatprep.subr.bf16.mxu0 %v56
  %64 = vmatpush1.bf16.msra.mxu0 %v55
  %65 = vmatprep.subr.bf16.mxu0 0
  %66 = vmatpush1.bf16.msra.mxu0 0
  %67 = vmatprep.subr.bf16.mxu0 0
  %68 = vmatpush1.bf16.msra.mxu0 0
  %69 = vmatprep.subr.bf16.mxu0 0
  %70 = vmatpush1.bf16.msra.mxu0 0
  %71 = vmatprep.subr.bf16.mxu0 0
  %72 = vmatpush1.bf16.msra.mxu0 0
  %73 = vmatprep.subr.bf16.mxu0 0
  %74 = vmatpush1.bf16.msra.mxu0 0
  %75 = vmatprep.subr.bf16.mxu0 0
  %76 = vmatpush1.bf16.msra.mxu0 0
  %77 = vmatprep.subr.bf16.mxu0 0
  %78 = vmatpush1.bf16.msra.mxu0 0
  %79 = vmatprep.subr.bf16.mxu0 0
  %80 = vmatpush1.bf16.msra.mxu0 0
  %81 = vmatprep.subr.bf16.mxu0 0
  %82 = vmatpush1.bf16.msra.mxu0 0
  %83 = vmatprep.subr.bf16.mxu0 0
  %84 = vmatpush1.bf16.msra.mxu0 0
  %85 = vmatprep.subr.bf16.mxu0 0
  %86 = vmatpush1.bf16.msra.mxu0 0
  %87 = vmatprep.subr.bf16.mxu0 0
  %88 = vmatpush1.bf16.msra.mxu0 0
  %89 = vmatprep.subr.bf16.mxu0 0
  %90 = vmatpush1.bf16.msra.mxu0 0
  %91 = vmatprep.subr.bf16.mxu0 0
  %92 = vmatpush1.bf16.msra.mxu0 0
  %93 = vmatprep.subr.bf16.mxu0 0
  %94 = vmatpush1.bf16.msra.mxu0 0
  %95 = vmatprep.mubr.bf16.mxu0 0
  %96 = vmatmul.mubr.bf16.gmra.mrb[0].mxu0 %v61
  %v97 = vpop.f32.mrb[0].mxu0
  %v98 = vadd.f32 %v42, %v97
  %v99 = vpop.f32.mrb[0].mxu0
  %v100 = vadd.f32 %v46, %v99
  %v101 = vpop.f32.mrb[0].mxu0
  %v102 = vpop.f32.mrb[0].mxu0
  %103 = vdwg.mxu0
  %v104 = vtanh.pop %v98
  %v105 = vtanh.pop %v100
  %v106 = vpack.c.bf16 %v104, %v104
  %v107 = vpack.c.bf16 %v105, %v105
  %v108 = vld [vmem:[%s3] sm:$0xff]
  %v109 = vld [vmem:[%s3 + $0x8] sm:$0xff]
  %v110 = vld [vmem:[%s3 + $0x10] sm:$0xff]
  %v111 = vld [vmem:[%s3 + $0x18] sm:$0xff]
  %v112 = vld [vmem:[%s3 + $0x20] sm:$0xff]
  %v113 = vld [vmem:[%s3 + $0x28] sm:$0xff]
  %v114 = vld [vmem:[%s3 + $0x30] sm:$0xff]
  %v115 = vld [vmem:[%s3 + $0x38] sm:$0xff]
  %v116 = vld [vmem:[%s3 + $0x40] sm:$0xff]
  %v117 = vld [vmem:[%s3 + $0x48] sm:$0xff]
  %v118 = vld [vmem:[%s3 + $0x50] sm:$0xff]
  %v119 = vld [vmem:[%s3 + $0x58] sm:$0xff]
  %v120 = vld [vmem:[%s3 + $0x60] sm:$0xff]
  %v121 = vld [vmem:[%s3 + $0x68] sm:$0xff]
  %v122 = vld [vmem:[%s3 + $0x70] sm:$0xff]
  %v123 = vld [vmem:[%s3 + $0x78] sm:$0xff]
  %v124 = vld [vmem:[%s3 + $0x80] sm:$0xff]
  %v125 = vld [vmem:[%s3 + $0x88] sm:$0xff]
  %v126 = vld [vmem:[%s3 + $0x90] sm:$0xff]
  %v127 = vld [vmem:[%s3 + $0x98] sm:$0xff]
  %v128 = vld [vmem:[%s3 + $0xa0] sm:$0xff]
  %v129 = vld [vmem:[%s3 + $0xa8] sm:$0xff]
  %v130 = vld [vmem:[%s3 + $0xb0] sm:$0xff]
  %v131 = vld [vmem:[%s3 + $0xb8] sm:$0xff]
  %v132 = vld [vmem:[%s3 + $0xc0] sm:$0xff]
  %v133 = vld [vmem:[%s3 + $0xc8] sm:$0xff]
  %v134 = vld [vmem:[%s3 + $0xd0] sm:$0xff]
  %v135 = vld [vmem:[%s3 + $0xd8] sm:$0xff]
  %v136 = vld [vmem:[%s3 + $0xe0] sm:$0xff]
  %v137 = vld [vmem:[%s3 + $0xe8] sm:$0xff]
  %v138 = vld [vmem:[%s3 + $0xf0] sm:$0xff]
  %v139 = vld [vmem:[%s3 + $0xf8] sm:$0xff]
  %v140 = vld [vmem:[%s4] sm:$0x3]
  %v142 = vlaneseq
  %v143 = vshrl.u32 %v142, 7
  %v144 = vsub.s32 0, %v143
  %v145 = vrot.slane %v140, %v144
  %v146 = vlaneseq
  %v147 = vshrl.u32 %v146, 7
  %v148 = vsub.s32 1, %v147
  %v149 = vrot.slane %v140, %v148
  %v184 = vunpack.c.l.b16 %v108
  %v185 = vunpack.c.h.b16 %v108
  %v186 = vunpack.c.l.b16 %v109
  %v187 = vunpack.c.h.b16 %v109
  %v188 = vunpack.c.l.b16 %v110
  %v189 = vunpack.c.h.b16 %v110
  %v190 = vunpack.c.l.b16 %v111
  %v191 = vunpack.c.h.b16 %v111
  %v192 = vunpack.c.l.b16 %v112
  %v193 = vunpack.c.h.b16 %v112
  %v194 = vunpack.c.l.b16 %v113
  %v195 = vunpack.c.h.b16 %v113
  %v196 = vunpack.c.l.b16 %v114
  %v197 = vunpack.c.h.b16 %v114
  %v198 = vunpack.c.l.b16 %v115
  %v199 = vunpack.c.h.b16 %v115
  %v200 = vunpack.c.l.b16 %v116
  %v201 = vunpack.c.h.b16 %v116
  %v202 = vunpack.c.l.b16 %v117
  %v203 = vunpack.c.h.b16 %v117
  %v204 = vunpack.c.l.b16 %v118
  %v205 = vunpack.c.h.b16 %v118
  %v206 = vunpack.c.l.b16 %v119
  %v207 = vunpack.c.h.b16 %v119
  %v208 = vunpack.c.l.b16 %v120
  %v209 = vunpack.c.h.b16 %v120
  %v210 = vunpack.c.l.b16 %v121
  %v211 = vunpack.c.h.b16 %v121
  %v212 = vunpack.c.l.b16 %v122
  %v213 = vunpack.c.h.b16 %v122
  %v214 = vunpack.c.l.b16 %v123
  %v215 = vunpack.c.h.b16 %v123
  %v216 = vunpack.c.l.b16 %v124
  %v217 = vunpack.c.h.b16 %v124
  %v218 = vunpack.c.l.b16 %v125
  %v219 = vunpack.c.h.b16 %v125
  %v220 = vunpack.c.l.b16 %v126
  %v221 = vunpack.c.h.b16 %v126
  %v222 = vunpack.c.l.b16 %v127
  %v223 = vunpack.c.h.b16 %v127
  %v224 = vunpack.c.l.b16 %v128
  %v225 = vunpack.c.h.b16 %v128
  %v226 = vunpack.c.l.b16 %v129
  %v227 = vunpack.c.h.b16 %v129
  %v228 = vunpack.c.l.b16 %v130
  %v229 = vunpack.c.h.b16 %v130
  %v230 = vunpack.c.l.b16 %v131
  %v231 = vunpack.c.h.b16 %v131
  %v232 = vunpack.c.l.b16 %v132
  %v233 = vunpack.c.h.b16 %v132
  %v234 = vunpack.c.l.b16 %v133
  %v235 = vunpack.c.h.b16 %v133
  %v236 = vunpack.c.l.b16 %v134
  %v237 = vunpack.c.h.b16 %v134
  %v238 = vunpack.c.l.b16 %v135
  %v239 = vunpack.c.h.b16 %v135
  %v240 = vunpack.c.l.b16 %v136
  %v241 = vunpack.c.h.b16 %v136
  %v242 = vunpack.c.l.b16 %v137
  %v243 = vunpack.c.h.b16 %v137
  %v244 = vunpack.c.l.b16 %v138
  %v245 = vunpack.c.h.b16 %v138
  %v246 = vunpack.c.l.b16 %v139
  %v247 = vunpack.c.h.b16 %v139
  %v248 = vpack.c.b16 %v186, %v184
  %v249 = vpack.c.b16 %v187, %v185
  %v250 = vpack.c.b16 %v190, %v188
  %v251 = vpack.c.b16 %v191, %v189
  %v252 = vpack.c.b16 %v194, %v192
  %v253 = vpack.c.b16 %v195, %v193
  %v254 = vpack.c.b16 %v198, %v196
  %v255 = vpack.c.b16 %v199, %v197
  %v256 = vpack.c.b16 %v202, %v200
  %v257 = vpack.c.b16 %v203, %v201
  %v258 = vpack.c.b16 %v206, %v204
  %v259 = vpack.c.b16 %v207, %v205
  %v260 = vpack.c.b16 %v210, %v208
  %v261 = vpack.c.b16 %v211, %v209
  %v262 = vpack.c.b16 %v214, %v212
  %v263 = vpack.c.b16 %v215, %v213
  %v264 = vpack.c.b16 %v218, %v216
  %v265 = vpack.c.b16 %v219, %v217
  %v266 = vpack.c.b16 %v222, %v220
  %v267 = vpack.c.b16 %v223, %v221
  %v268 = vpack.c.b16 %v226, %v224
  %v269 = vpack.c.b16 %v227, %v225
  %v270 = vpack.c.b16 %v230, %v228
  %v271 = vpack.c.b16 %v231, %v229
  %v272 = vpack.c.b16 %v234, %v232
  %v273 = vpack.c.b16 %v235, %v233
  %v274 = vpack.c.b16 %v238, %v236
  %v275 = vpack.c.b16 %v239, %v237
  %v276 = vpack.c.b16 %v242, %v240
  %v277 = vpack.c.b16 %v243, %v241
  %v278 = vpack.c.b16 %v246, %v244
  %v279 = vpack.c.b16 %v247, %v245
  %312 = vmatprep.subr.bf16.mxu0 %v249
  %313 = vmatpush1.bf16.msra.mxu0 %v248
  %314 = vmatprep.subr.bf16.mxu0 %v251
  %315 = vmatpush1.bf16.msra.mxu0 %v250
  %316 = vmatprep.subr.bf16.mxu0 %v253
  %317 = vmatpush1.bf16.msra.mxu0 %v252
  %318 = vmatprep.subr.bf16.mxu0 %v255
  %319 = vmatpush1.bf16.msra.mxu0 %v254
  %320 = vmatprep.subr.bf16.mxu0 %v257
  %321 = vmatpush1.bf16.msra.mxu0 %v256
  %322 = vmatprep.subr.bf16.mxu0 %v259
  %323 = vmatpush1.bf16.msra.mxu0 %v258
  %324 = vmatprep.subr.bf16.mxu0 %v261
  %325 = vmatpush1.bf16.msra.mxu0 %v260
  %326 = vmatprep.subr.bf16.mxu0 %v263
  %327 = vmatpush1.bf16.msra.mxu0 %v262
  %328 = vmatprep.subr.bf16.mxu0 %v265
  %329 = vmatpush1.bf16.msra.mxu0 %v264
  %330 = vmatprep.subr.bf16.mxu0 %v267
  %331 = vmatpush1.bf16.msra.mxu0 %v266
  %332 = vmatprep.subr.bf16.mxu0 %v269
  %333 = vmatpush1.bf16.msra.mxu0 %v268
  %334 = vmatprep.subr.bf16.mxu0 %v271
  %335 = vmatpush1.bf16.msra.mxu0 %v270
  %336 = vmatprep.subr.bf16.mxu0 %v273
  %337 = vmatpush1.bf16.msra.mxu0 %v272
  %338 = vmatprep.subr.bf16.mxu0 %v275
  %339 = vmatpush1.bf16.msra.mxu0 %v274
  %340 = vmatprep.subr.bf16.mxu0 %v277
  %341 = vmatpush1.bf16.msra.mxu0 %v276
  %342 = vmatprep.subr.bf16.mxu0 %v279
  %343 = vmatpush1.bf16.msra.mxu0 %v278
  %344 = vmatprep.mubr.bf16.mxu0 %v107
  %345 = vmatmul.mubr.bf16.gmra.mrb[0].mxu0 %v106
  %v346 = vpop.f32.mrb[0].mxu0
  %v347 = vadd.f32 %v145, %v346
  %v348 = vpop.f32.mrb[0].mxu0
  %v349 = vadd.f32 %v149, %v348
  %v350 = vpop.f32.mrb[0].mxu0
  %v351 = vpop.f32.mrb[0].mxu0
  %352 = vdwg.mxu0
  %v353 = vtanh.pop %v347
  %v354 = vtanh.pop %v349
  %v355 = vpack.c.bf16 %v353, %v353
  %v356 = vpack.c.bf16 %v354, %v354
  %v357 = vld [vmem:[%s5] sm:$0xff]
  %v358 = vld [vmem:[%s5 + $0x8] sm:$0xff]
  %v359 = vld [vmem:[%s5 + $0x10] sm:$0xff]
  %v360 = vld [vmem:[%s5 + $0x18] sm:$0xff]
  %v361 = vld [vmem:[%s5 + $0x20] sm:$0xff]
  %v362 = vld [vmem:[%s5 + $0x28] sm:$0xff]
  %v363 = vld [vmem:[%s5 + $0x30] sm:$0xff]
  %v364 = vld [vmem:[%s5 + $0x38] sm:$0xff]
  %v365 = vld [vmem:[%s5 + $0x40] sm:$0xff]
  %v366 = vld [vmem:[%s5 + $0x48] sm:$0xff]
  %v367 = vld [vmem:[%s5 + $0x50] sm:$0xff]
  %v368 = vld [vmem:[%s5 + $0x58] sm:$0xff]
  %v369 = vld [vmem:[%s5 + $0x60] sm:$0xff]
  %v370 = vld [vmem:[%s5 + $0x68] sm:$0xff]
  %v371 = vld [vmem:[%s5 + $0x70] sm:$0xff]
  %v372 = vld [vmem:[%s5 + $0x78] sm:$0xff]
  %v373 = vld [vmem:[%s5 + $0x80] sm:$0xff]
  %v374 = vld [vmem:[%s5 + $0x88] sm:$0xff]
  %v375 = vld [vmem:[%s5 + $0x90] sm:$0xff]
  %v376 = vld [vmem:[%s5 + $0x98] sm:$0xff]
  %v377 = vld [vmem:[%s5 + $0xa0] sm:$0xff]
  %v378 = vld [vmem:[%s5 + $0xa8] sm:$0xff]
  %v379 = vld [vmem:[%s5 + $0xb0] sm:$0xff]
  %v380 = vld [vmem:[%s5 + $0xb8] sm:$0xff]
  %v381 = vld [vmem:[%s5 + $0xc0] sm:$0xff]
  %v382 = vld [vmem:[%s5 + $0xc8] sm:$0xff]
  %v383 = vld [vmem:[%s5 + $0xd0] sm:$0xff]
  %v384 = vld [vmem:[%s5 + $0xd8] sm:$0xff]
  %v385 = vld [vmem:[%s5 + $0xe0] sm:$0xff]
  %v386 = vld [vmem:[%s5 + $0xe8] sm:$0xff]
  %v387 = vld [vmem:[%s5 + $0xf0] sm:$0xff]
  %v388 = vld [vmem:[%s5 + $0xf8] sm:$0xff]
  %v389 = vld [vmem:[%s6] sm:$0x3]
  %v391 = vlaneseq
  %v392 = vshrl.u32 %v391, 7
  %v393 = vsub.s32 0, %v392
  %v394 = vrot.slane %v389, %v393
  %v395 = vlaneseq
  %v396 = vshrl.u32 %v395, 7
  %v397 = vsub.s32 1, %v396
  %v398 = vrot.slane %v389, %v397
  %v433 = vunpack.c.l.b16 %v357
  %v434 = vunpack.c.h.b16 %v357
  %v435 = vunpack.c.l.b16 %v358
  %v436 = vunpack.c.h.b16 %v358
  %v437 = vunpack.c.l.b16 %v359
  %v438 = vunpack.c.h.b16 %v359
  %v439 = vunpack.c.l.b16 %v360
  %v440 = vunpack.c.h.b16 %v360
  %v441 = vunpack.c.l.b16 %v361
  %v442 = vunpack.c.h.b16 %v361
  %v443 = vunpack.c.l.b16 %v362
  %v444 = vunpack.c.h.b16 %v362
  %v445 = vunpack.c.l.b16 %v363
  %v446 = vunpack.c.h.b16 %v363
  %v447 = vunpack.c.l.b16 %v364
  %v448 = vunpack.c.h.b16 %v364
  %v449 = vunpack.c.l.b16 %v365
  %v450 = vunpack.c.h.b16 %v365
  %v451 = vunpack.c.l.b16 %v366
  %v452 = vunpack.c.h.b16 %v366
  %v453 = vunpack.c.l.b16 %v367
  %v454 = vunpack.c.h.b16 %v367
  %v455 = vunpack.c.l.b16 %v368
  %v456 = vunpack.c.h.b16 %v368
  %v457 = vunpack.c.l.b16 %v369
  %v458 = vunpack.c.h.b16 %v369
  %v459 = vunpack.c.l.b16 %v370
  %v460 = vunpack.c.h.b16 %v370
  %v461 = vunpack.c.l.b16 %v371
  %v462 = vunpack.c.h.b16 %v371
  %v463 = vunpack.c.l.b16 %v372
  %v464 = vunpack.c.h.b16 %v372
  %v465 = vunpack.c.l.b16 %v373
  %v466 = vunpack.c.h.b16 %v373
  %v467 = vunpack.c.l.b16 %v374
  %v468 = vunpack.c.h.b16 %v374
  %v469 = vunpack.c.l.b16 %v375
  %v470 = vunpack.c.h.b16 %v375
  %v471 = vunpack.c.l.b16 %v376
  %v472 = vunpack.c.h.b16 %v376
  %v473 = vunpack.c.l.b16 %v377
  %v474 = vunpack.c.h.b16 %v377
  %v475 = vunpack.c.l.b16 %v378
  %v476 = vunpack.c.h.b16 %v378
  %v477 = vunpack.c.l.b16 %v379
  %v478 = vunpack.c.h.b16 %v379
  %v479 = vunpack.c.l.b16 %v380
  %v480 = vunpack.c.h.b16 %v380
  %v481 = vunpack.c.l.b16 %v381
  %v482 = vunpack.c.h.b16 %v381
  %v483 = vunpack.c.l.b16 %v382
  %v484 = vunpack.c.h.b16 %v382
  %v485 = vunpack.c.l.b16 %v383
  %v486 = vunpack.c.h.b16 %v383
  %v487 = vunpack.c.l.b16 %v384
  %v488 = vunpack.c.h.b16 %v384
  %v489 = vunpack.c.l.b16 %v385
  %v490 = vunpack.c.h.b16 %v385
  %v491 = vunpack.c.l.b16 %v386
  %v492 = vunpack.c.h.b16 %v386
  %v493 = vunpack.c.l.b16 %v387
  %v494 = vunpack.c.h.b16 %v387
  %v495 = vunpack.c.l.b16 %v388
  %v496 = vunpack.c.h.b16 %v388
  %v497 = vpack.c.b16 %v435, %v433
  %v498 = vpack.c.b16 %v436, %v434
  %v499 = vpack.c.b16 %v439, %v437
  %v500 = vpack.c.b16 %v440, %v438
  %v501 = vpack.c.b16 %v443, %v441
  %v502 = vpack.c.b16 %v444, %v442
  %v503 = vpack.c.b16 %v447, %v445
  %v504 = vpack.c.b16 %v448, %v446
  %v505 = vpack.c.b16 %v451, %v449
  %v506 = vpack.c.b16 %v452, %v450
  %v507 = vpack.c.b16 %v455, %v453
  %v508 = vpack.c.b16 %v456, %v454
  %v509 = vpack.c.b16 %v459, %v457
  %v510 = vpack.c.b16 %v460, %v458
  %v511 = vpack.c.b16 %v463, %v461
  %v512 = vpack.c.b16 %v464, %v462
  %v513 = vpack.c.b16 %v467, %v465
  %v514 = vpack.c.b16 %v468, %v466
  %v515 = vpack.c.b16 %v471, %v469
  %v516 = vpack.c.b16 %v472, %v470
  %v517 = vpack.c.b16 %v475, %v473
  %v518 = vpack.c.b16 %v476, %v474
  %v519 = vpack.c.b16 %v479, %v477
  %v520 = vpack.c.b16 %v480, %v478
  %v521 = vpack.c.b16 %v483, %v481
  %v522 = vpack.c.b16 %v484, %v482
  %v523 = vpack.c.b16 %v487, %v485
  %v524 = vpack.c.b16 %v488, %v486
  %v525 = vpack.c.b16 %v491, %v489
  %v526 = vpack.c.b16 %v492, %v490
  %v527 = vpack.c.b16 %v495, %v493
  %v528 = vpack.c.b16 %v496, %v494
  %561 = vmatprep.subr.bf16.mxu0 %v498
  %562 = vmatpush1.bf16.msra.mxu0 %v497
  %563 = vmatprep.subr.bf16.mxu0 %v500
  %564 = vmatpush1.bf16.msra.mxu0 %v499
  %565 = vmatprep.subr.bf16.mxu0 %v502
  %566 = vmatpush1.bf16.msra.mxu0 %v501
  %567 = vmatprep.subr.bf16.mxu0 %v504
  %568 = vmatpush1.bf16.msra.mxu0 %v503
  %569 = vmatprep.subr.bf16.mxu0 %v506
  %570 = vmatpush1.bf16.msra.mxu0 %v505
  %571 = vmatprep.subr.bf16.mxu0 %v508
  %572 = vmatpush1.bf16.msra.mxu0 %v507
  %573 = vmatprep.subr.bf16.mxu0 %v510
  %574 = vmatpush1.bf16.msra.mxu0 %v509
  %575 = vmatprep.subr.bf16.mxu0 %v512
  %576 = vmatpush1.bf16.msra.mxu0 %v511
  %577 = vmatprep.subr.bf16.mxu0 %v514
  %578 = vmatpush1.bf16.msra.mxu0 %v513
  %579 = vmatprep.subr.bf16.mxu0 %v516
  %580 = vmatpush1.bf16.msra.mxu0 %v515
  %581 = vmatprep.subr.bf16.mxu0 %v518
  %582 = vmatpush1.bf16.msra.mxu0 %v517
  %583 = vmatprep.subr.bf16.mxu0 %v520
  %584 = vmatpush1.bf16.msra.mxu0 %v519
  %585 = vmatprep.subr.bf16.mxu0 %v522
  %586 = vmatpush1.bf16.msra.mxu0 %v521
  %587 = vmatprep.subr.bf16.mxu0 %v524
  %588 = vmatpush1.bf16.msra.mxu0 %v523
  %589 = vmatprep.subr.bf16.mxu0 %v526
  %590 = vmatpush1.bf16.msra.mxu0 %v525
  %591 = vmatprep.subr.bf16.mxu0 %v528
  %592 = vmatpush1.bf16.msra.mxu0 %v527
  %593 = vmatprep.mubr.bf16.mxu0 %v356
  %594 = vmatmul.mubr.bf16.gmra.mrb[0].mxu0 %v355
  %v595 = vpop.f32.mrb[0].mxu0
  %v596 = vadd.f32 %v394, %v595
  %v597 = vpop.f32.mrb[0].mxu0
  %v598 = vadd.f32 %v398, %v597
  %v599 = vpop.f32.mrb[0].mxu0
  %v600 = vpop.f32.mrb[0].mxu0
  %601 = vdwg.mxu0
  %v602 = vtanh.pop %v596
  %v603 = vtanh.pop %v598
  %v604 = vpack.c.bf16 %v602, %v602
  %v605 = vpack.c.bf16 %v603, %v603
  %v606 = vld [vmem:[%s7] sm:$0xf]
  %v607 = vld [vmem:[%s7 + $0x4] sm:$0xf]
  %v608 = vld [vmem:[%s7 + $0x8] sm:$0xf]
  %v609 = vld [vmem:[%s7 + $0xc] sm:$0xf]
  %v610 = vld [vmem:[%s7 + $0x10] sm:$0xf]
  %v611 = vld [vmem:[%s7 + $0x14] sm:$0xf]
  %v612 = vld [vmem:[%s7 + $0x18] sm:$0xf]
  %v613 = vld [vmem:[%s7 + $0x1c] sm:$0xf]
  %v614 = vld [vmem:[%s7 + $0x20] sm:$0xf]
  %v615 = vld [vmem:[%s7 + $0x24] sm:$0xf]
  %v616 = vld [vmem:[%s7 + $0x28] sm:$0xf]
  %v617 = vld [vmem:[%s7 + $0x2c] sm:$0xf]
  %v618 = vld [vmem:[%s7 + $0x30] sm:$0xf]
  %v619 = vld [vmem:[%s7 + $0x34] sm:$0xf]
  %v620 = vld [vmem:[%s7 + $0x38] sm:$0xf]
  %v621 = vld [vmem:[%s7 + $0x3c] sm:$0xf]
  %v622 = vld [vmem:[%s7 + $0x40] sm:$0xf]
  %v623 = vld [vmem:[%s7 + $0x44] sm:$0xf]
  %v624 = vld [vmem:[%s7 + $0x48] sm:$0xf]
  %v625 = vld [vmem:[%s7 + $0x4c] sm:$0xf]
  %v626 = vld [vmem:[%s7 + $0x50] sm:$0xf]
  %v627 = vld [vmem:[%s7 + $0x54] sm:$0xf]
  %v628 = vld [vmem:[%s7 + $0x58] sm:$0xf]
  %v629 = vld [vmem:[%s7 + $0x5c] sm:$0xf]
  %v630 = vld [vmem:[%s7 + $0x60] sm:$0xf]
  %v631 = vld [vmem:[%s7 + $0x64] sm:$0xf]
  %v632 = vld [vmem:[%s7 + $0x68] sm:$0xf]
  %v633 = vld [vmem:[%s7 + $0x6c] sm:$0xf]
  %v634 = vld [vmem:[%s7 + $0x70] sm:$0xf]
  %v635 = vld [vmem:[%s7 + $0x74] sm:$0xf]
  %v636 = vld [vmem:[%s7 + $0x78] sm:$0xf]
  %v637 = vld [vmem:[%s7 + $0x7c] sm:$0xf]
  %v638 = vld [vmem:[%s8] sm:$0x1]
  %v640 = vlaneseq
  %v641 = vshrl.u32 %v640, 7
  %v642 = vsub.s32 0, %v641
  %v643 = vrot.slane %v638, %v642
  %v677 = vunpack.c.l.b16 %v606
  %v678 = vunpack.c.l.b16 %v607
  %v679 = vunpack.c.l.b16 %v608
  %v680 = vunpack.c.l.b16 %v609
  %v681 = vunpack.c.l.b16 %v610
  %v682 = vunpack.c.l.b16 %v611
  %v683 = vunpack.c.l.b16 %v612
  %v684 = vunpack.c.l.b16 %v613
  %v685 = vunpack.c.l.b16 %v614
  %v686 = vunpack.c.l.b16 %v615
  %v687 = vunpack.c.l.b16 %v616
  %v688 = vunpack.c.l.b16 %v617
  %v689 = vunpack.c.l.b16 %v618
  %v690 = vunpack.c.l.b16 %v619
  %v691 = vunpack.c.l.b16 %v620
  %v692 = vunpack.c.l.b16 %v621
  %v693 = vunpack.c.l.b16 %v622
  %v694 = vunpack.c.l.b16 %v623
  %v695 = vunpack.c.l.b16 %v624
  %v696 = vunpack.c.l.b16 %v625
  %v697 = vunpack.c.l.b16 %v626
  %v698 = vunpack.c.l.b16 %v627
  %v699 = vunpack.c.l.b16 %v628
  %v700 = vunpack.c.l.b16 %v629
  %v701 = vunpack.c.l.b16 %v630
  %v702 = vunpack.c.l.b16 %v631
  %v703 = vunpack.c.l.b16 %v632
  %v704 = vunpack.c.l.b16 %v633
  %v705 = vunpack.c.l.b16 %v634
  %v706 = vunpack.c.l.b16 %v635
  %v707 = vunpack.c.l.b16 %v636
  %v708 = vunpack.c.l.b16 %v637
  %v709 = vpack.c.b16 %v678, %v677
  %v710 = vpack.c.b16 %v680, %v679
  %v711 = vpack.c.b16 %v682, %v681
  %v712 = vpack.c.b16 %v684, %v683
  %v713 = vpack.c.b16 %v686, %v685
  %v714 = vpack.c.b16 %v688, %v687
  %v715 = vpack.c.b16 %v690, %v689
  %v716 = vpack.c.b16 %v692, %v691
  %v717 = vpack.c.b16 %v694, %v693
  %v718 = vpack.c.b16 %v696, %v695
  %v719 = vpack.c.b16 %v698, %v697
  %v720 = vpack.c.b16 %v700, %v699
  %v721 = vpack.c.b16 %v702, %v701
  %v722 = vpack.c.b16 %v704, %v703
  %v723 = vpack.c.b16 %v706, %v705
  %v724 = vpack.c.b16 %v708, %v707
  %741 = vmatprep.subr.bf16.mxu0 0
  %742 = vmatpush1.bf16.msra.mxu0 %v709
  %743 = vmatprep.subr.bf16.mxu0 0
  %744 = vmatpush1.bf16.msra.mxu0 %v710
  %745 = vmatprep.subr.bf16.mxu0 0
  %746 = vmatpush1.bf16.msra.mxu0 %v711
  %747 = vmatprep.subr.bf16.mxu0 0
  %748 = vmatpush1.bf16.msra.mxu0 %v712
  %749 = vmatprep.subr.bf16.mxu0 0
  %750 = vmatpush1.bf16.msra.mxu0 %v713
  %751 = vmatprep.subr.bf16.mxu0 0
  %752 = vmatpush1.bf16.msra.mxu0 %v714
  %753 = vmatprep.subr.bf16.mxu0 0
  %754 = vmatpush1.bf16.msra.mxu0 %v715
  %755 = vmatprep.subr.bf16.mxu0 0
  %756 = vmatpush1.bf16.msra.mxu0 %v716
  %757 = vmatprep.subr.bf16.mxu0 0
  %758 = vmatpush1.bf16.msra.mxu0 %v717
  %759 = vmatprep.subr.bf16.mxu0 0
  %760 = vmatpush1.bf16.msra.mxu0 %v718
  %761 = vmatprep.subr.bf16.mxu0 0
  %762 = vmatpush1.bf16.msra.mxu0 %v719
  %763 = vmatprep.subr.bf16.mxu0 0
  %764 = vmatpush1.bf16.msra.mxu0 %v720
  %765 = vmatprep.subr.bf16.mxu0 0
  %766 = vmatpush1.bf16.msra.mxu0 %v721
  %767 = vmatprep.subr.bf16.mxu0 0
  %768 = vmatpush1.bf16.msra.mxu0 %v722
  %769 = vmatprep.subr.bf16.mxu0 0
  %770 = vmatpush1.bf16.msra.mxu0 %v723
  %771 = vmatprep.subr.bf16.mxu0 0
  %772 = vmatpush1.bf16.msra.mxu0 %v724
  %773 = vmatprep.mubr.bf16.mxu0 %v605
  %774 = vmatmul.mubr.bf16.gmra.mrb[0].mxu0 %v604
  %v775 = vpop.f32.mrb[0].mxu0
  %v776 = vadd.f32 %v643, %v775
  %v777 = vpop.f32.mrb[0].mxu0
  %v778 = vpop.f32.mrb[0].mxu0
  %v779 = vpop.f32.mrb[0].mxu0
  %780 = vdwg.mxu0
  %v781 = vmax.f32 %v776, 1.0
  %782 = vst [vmem:[%s9] sm:$0xff] %v781
  // Predicated region
  $region38: #{continuous_actor_forward.1} parent=0 // pred_check
    _
  $region39: #{continuous_actor_forward.1} parent=0 // pred_check_branch
    %784 = sbr.rel (0) target = $region41
  $region40: #{continuous_actor_forward.1} parent=0 // pred_region
    _
  $region41: #{continuous_actor_forward.1} parent=0 // pred_fallthru
    _
  // Predicated region
  $region42: #{continuous_actor_forward.1} parent=0 // pred_check
    _
  $region43: #{continuous_actor_forward.1} parent=0 // pred_check_branch
    %786 = sbr.rel (0) target = $region45
  $region44: #{continuous_actor_forward.1} parent=0 // pred_region
    _
  $region45: #{continuous_actor_forward.1} parent=0 // pred_fallthru
    _

</llo_original>
